<compile_context>
chip_gen: v7x
topology: tpu7x:2x2x1
jax: 0.10.0
libtpu: 0.0.40
codegen_flags: <defaults>
</compile_context>

<pallas_src>
import functools

import jax
import jax.numpy as jnp
from jax import lax
from jax.experimental import pallas as pl
from jax.experimental.pallas import tpu as pltpu

LN_EPS = 1e-5

# Rows of the packed per-layer small-parameter tensor `pvec` (depth, 5, H).
_TOK_GAMMA, _TOK_BETA, _FEAT_GAMMA, _FEAT_BETA, _FEAT_BIAS = range(5)


def _gelu(x):
    # exact erf-based GELU, matching torch.nn.GELU() default
    # TODO(synk): switch to the tanh approximation if exact torch matching is
    # not required (erf is the main non-MXU cost once weights are bf16).
    return 0.5 * x * (1.0 + lax.erf(x * 0.7071067811865476))


def _layernorm(x, gamma, beta):
    # two-pass mean / variance, same math as torch.nn.LayerNorm
    mu = jnp.mean(x, axis=-1, keepdims=True)
    xc = x - mu
    var = jnp.mean(xc * xc, axis=-1, keepdims=True)
    return xc * lax.rsqrt(var + LN_EPS) * gamma + beta


def fire_mixer_kernel(
    x_ref,     # (Bb*S, H)  input activation slab for this batch tile
    pvec_ref,  # (5, H)     packed small params of layer d (see row constants)
    bt_ref,    # (S, 1)     token-mixer bias of layer d
    wt_ref,    # (S, S)     token-mixer weight of layer d
    wf_ref,    # (H, H)     feature-mixer weight of layer d
    o_ref,     # (Bb*S, H)  output slab (written on the last layer only)
    act_ref,   # (Bb*S, H)  f32 VMEM scratch: activation carried across layers
    *, batch_tile, seq_len,
):
    d = pl.program_id(1)

    @pl.when(d == 0)
    def _():
        act_ref[...] = x_ref[...].astype(jnp.float32)

    x = act_ref[...]  # f32 (Bb*S, H)

    # Hoist small-parameter casts: one f32 cast of the packed (5, H) tile.
    pvec = pvec_ref[...].astype(jnp.float32)
    tok_gamma = pvec[_TOK_GAMMA:_TOK_GAMMA + 1, :]
    tok_beta = pvec[_TOK_BETA:_TOK_BETA + 1, :]
    feat_gamma = pvec[_FEAT_GAMMA:_FEAT_GAMMA + 1, :]
    feat_beta = pvec[_FEAT_BETA:_FEAT_BETA + 1, :]
    feat_bias = pvec[_FEAT_BIAS:_FEAT_BIAS + 1, :]
    tok_bias = bt_ref[...].astype(jnp.float32)          # (S, 1)

    # ---- token branch: LN -> dense over tokens -> +bias +residual -> GELU ----
    y = _layernorm(x, tok_gamma, tok_beta).astype(wt_ref.dtype)
    wt = wt_ref[...]                                     # (S, S)
    if batch_tile == 1:
        tok = jnp.dot(wt, y, preferred_element_type=jnp.float32) + tok_bias
    else:
        chunks = []
        for b in range(batch_tile):                      # small unrolled batch loop
            yb = y[b * seq_len:(b + 1) * seq_len, :]     # aligned static slice (S % 8 == 0)
            chunks.append(
                jnp.dot(wt, yb, preferred_element_type=jnp.float32) + tok_bias)
        tok = jnp.concatenate(chunks, axis=0)
    x = _gelu(tok + x)

    # ---- feature branch: LN -> dense over hidden -> +bias +residual -> GELU ----
    # Batch is folded into M: one (Bb*S, H) @ (H, H) matmul keeps the MXU full.
    # TODO(synk): DropPath is identity at inference; stochastic depth not implemented.
    y = _layernorm(x, feat_gamma, feat_beta)
    feat = jnp.dot(y.astype(wf_ref.dtype), wf_ref[...],
                   preferred_element_type=jnp.float32)
    x = _gelu(feat + feat_bias + x)

    act_ref[...] = x

    @pl.when(d == pl.num_programs(1) - 1)
    def _():
        o_ref[...] = x.astype(o_ref.dtype)


def _vmem_budget_bytes():
    """Generation-aware scoped-VMEM budget (~3/4 of physical per-core VMEM)."""
    # v7x: 64 MiB physical  -> ~48 MiB budget (leave compiler headroom)
    # v5e/v6e: 128 MiB      -> ~96 MiB budget
    try:
        cap = int(pltpu.get_tpu_info().vmem_capacity_bytes)
        if cap > 0:
            return (cap * 3) // 4
    except Exception:
        pass
    return 48 * 1024 * 1024  # conservative fallback, safe on every generation


def fire_mixer_forward(x, params, *, batch_tile=None, vmem_limit_bytes=None):
    """x: [B, S, H] -> [B, S, H], full FireMixer (all layers in one kernel)."""
    pvec, bt, wt, wf = params
    B, S, H = x.shape
    depth = wt.shape[0]
    if S % 8 != 0 or H % 128 != 0:
        # TODO(synk): pad S to a multiple of 8 / H to a multiple of 128 for odd shapes.
        raise ValueError("fire_mixer_forward requires S % 8 == 0 and H % 128 == 0")

    layer_param_bytes = sum(
        int(p.size) * p.dtype.itemsize for p in (pvec, bt, wt, wf)) // depth

    def vmem_need(bb):
        blk = bb * S * H
        return (blk * 4                          # f32 activation carry (scratch)
                + 2 * 2 * blk * x.dtype.itemsize  # double-buffered in + out blocks
                + 2 * layer_param_bytes           # double-buffered per-layer params
                + 4 * 1024 * 1024)                # compiler-internal headroom

    budget = _vmem_budget_bytes()
    if batch_tile is None:
        divisors = [bb for bb in range(1, B + 1) if B % bb == 0]
        fitting = [bb for bb in divisors if vmem_need(bb) <= budget] or [1]
        # Keep >= 2 batch tiles when possible so the "parallel" grid axis can
        # shard across the two v7x TensorCores; otherwise take the largest tile.
        two_core = [bb for bb in fitting if B // bb >= 2]
        batch_tile = max(two_core) if two_core else max(fitting)
    if B % batch_tile != 0:
        raise ValueError("batch_tile must divide B")

    nb = B // batch_tile
    rows = batch_tile * S
    if vmem_limit_bytes is None:
        vmem_limit_bytes = int(min(budget, max(vmem_need(batch_tile),
                                               16 * 1024 * 1024)))

    x2 = x.reshape(B * S, H)  # free row-major reshape -> lane-dense 2-D slab

    param_bytes = layer_param_bytes * depth
    x_bytes = int(x.size) * x.dtype.itemsize
    cost = pl.CostEstimate(
        flops=2 * B * S * (S + H) * H * depth + 12 * B * S * H * depth,
        transcendentals=2 * B * S * H * depth,            # one erf per GELU element
        bytes_accessed=2 * x_bytes + nb * param_bytes,    # weights streamed once per batch tile
    )

    act_map = lambda b, d: (b, 0)        # activation slabs follow the batch-tile axis
    layer_map = lambda b, d: (d, 0, 0)   # parameter blocks follow the layer axis

    kernel = functools.partial(fire_mixer_kernel,
                               batch_tile=batch_tile, seq_len=S)

    out2 = pl.pallas_call(
        kernel,
        out_shape=jax.ShapeDtypeStruct((B * S, H), x.dtype),
        grid_spec=pltpu.PrefetchScalarGridSpec(
            num_scalar_prefetch=0,
            grid=(nb, depth),
            in_specs=[
                pl.BlockSpec((rows, H), act_map),                 # x slab
                pl.BlockSpec((pl.Squeezed(), 5, H), layer_map),   # packed small params
                pl.BlockSpec((pl.Squeezed(), S, 1), layer_map),   # token-mixer bias
                pl.BlockSpec((pl.Squeezed(), S, S), layer_map),   # token-mixer weight
                pl.BlockSpec((pl.Squeezed(), H, H), layer_map),   # feature-mixer weight
            ],
            out_specs=pl.BlockSpec((rows, H), act_map),
            scratch_shapes=[pltpu.VMEM((rows, H), jnp.float32)],
        ),
        compiler_params=pltpu.CompilerParams(
            dimension_semantics=("parallel", "arbitrary"),
            vmem_limit_bytes=int(vmem_limit_bytes),
        ),
        cost_estimate=cost,
    )(x2, pvec, bt, wt, wf)

    return out2.reshape(B, S, H)


fire_mixer = jax.jit(fire_mixer_forward,
                     static_argnames=("batch_tile", "vmem_limit_bytes"))


def init_fire_mixer_params(key, depth, seq_len, hidden_dim, dtype=jnp.bfloat16):
    """Deterministic synthetic params, packed + stacked along a leading depth axis.

    Returns (pvec, bt, wt, wf):
      pvec: (depth, 5, H)  rows = [tok_gamma, tok_beta, feat_gamma, feat_beta, feat_bias]
      bt:   (depth, S, 1)  token-mixer bias
      wt:   (depth, S, S)  token-mixer weight
      wf:   (depth, H, H)  feature-mixer weight
    """
    k1, k2 = jax.random.split(key)
    tng = jnp.ones((depth, hidden_dim), jnp.float32)
    tnb = jnp.zeros((depth, hidden_dim), jnp.float32)
    fng = jnp.ones((depth, hidden_dim), jnp.float32)
    fnb = jnp.zeros((depth, hidden_dim), jnp.float32)
    bf = jnp.zeros((depth, hidden_dim), jnp.float32)
    pvec = jnp.stack([tng, tnb, fng, fnb, bf], axis=1).astype(dtype)
    bt = jnp.zeros((depth, seq_len, 1), dtype)
    wt = (jax.random.normal(k1, (depth, seq_len, seq_len), jnp.float32) * 0.02).astype(dtype)
    wf = (jax.random.normal(k2, (depth, hidden_dim, hidden_dim), jnp.float32) * 0.02).astype(dtype)
    return (pvec, bt, wt, wf)


def _reference(x, params):
    """Pure-JAX reference mirroring the kernel numerics (bf16 matmuls, f32 rest)."""
    pvec, bt, wt, wf = params
    x = x.astype(jnp.float32)
    depth = wt.shape[0]
    for d in range(depth):
        p = pvec[d].astype(jnp.float32)
        res = x
        y = _layernorm(x, p[_TOK_GAMMA], p[_TOK_BETA])
        tok = jnp.einsum("st,bth->bsh", wt[d], y.astype(wt.dtype),
                         preferred_element_type=jnp.float32)
        x = _gelu(tok + bt[d].astype(jnp.float32)[None] + res)
        res = x
        y = _layernorm(x, p[_FEAT_GAMMA], p[_FEAT_BETA])
        feat = jnp.einsum("bsh,hk->bsk", y.astype(wf.dtype), wf[d],
                          preferred_element_type=jnp.float32)
        x = _gelu(feat + p[_FEAT_BIAS][None, None] + res)
    return x


if __name__ == "__main__":
    B, S, H = 2, 8, 128   # batch, tokens, hidden (S % 8 == 0, H % 128 == 0)
    DEPTH = 2

    key = jax.random.PRNGKey(0)
    kx, kp = jax.random.split(key)
    x = jax.random.normal(kx, (B, S, H), jnp.float32)
    params = init_fire_mixer_params(kp, DEPTH, S, H, dtype=jnp.bfloat16)

    out = fire_mixer(x, params)
    out = jax.block_until_ready(out)

    ref = _reference(x, params)
    assert out.shape == (B, S, H)
    max_err = float(jnp.max(jnp.abs(out - ref)))
    assert jnp.allclose(out, ref, atol=2e-3, rtol=2e-3), (
        f"mismatch vs reference (max abs err {max_err})")

    print("KERNEL_OK")
</pallas_src>

<mosaic_0001>
module attributes {stable_mosaic.version = 11 : i64} {
  func.func @fire_mixer_kernel(%arg0: i32, %arg1: i32, %arg2: memref<8x128xf32, #tpu.memory_space<vmem>>, %arg3: memref<1x5x128xbf16, #tpu.memory_space<vmem>>, %arg4: memref<1x8x1xbf16, #tpu.memory_space<vmem>>, %arg5: memref<1x8x8xbf16, #tpu.memory_space<vmem>>, %arg6: memref<1x128x128xbf16, #tpu.memory_space<vmem>>, %arg7: memref<8x128xf32, #tpu.memory_space<vmem>>, %arg8: memref<8x128xf32, #tpu.memory_space<vmem>>) attributes {dimension_semantics = [#tpu.dimension_semantics<parallel>, #tpu.dimension_semantics<arbitrary>], iteration_bounds = array<i64: 2, 2>, scalar_prefetch = 0 : i64, scratch_operands = 1 : i64, tpu.core_type = #tpu.core_type<tc>, window_params = [{transform_indices = @transform_0, window_bounds = array<i64: 8, 128>}, {transform_indices = @transform_1, window_bounds = array<i64: 1, 5, 128>}, {transform_indices = @transform_2, window_bounds = array<i64: 1, 8, 1>}, {transform_indices = @transform_3, window_bounds = array<i64: 1, 8, 8>}, {transform_indices = @transform_4, window_bounds = array<i64: 1, 128, 128>}, {transform_indices = @transform_5, window_bounds = array<i64: 8, 128>}]} {
    %c0_i32 = arith.constant 0 : i32
    %0 = arith.cmpi eq, %arg1, %c0_i32 : i32
    %1 = arith.extui %0 : i1 to i32
    %c0_i32_0 = arith.constant 0 : i32
    %2 = arith.cmpi ne, %1, %c0_i32_0 : i32
    scf.if %2 {
      %c0_34 = arith.constant 0 : index
      %c0_35 = arith.constant 0 : index
      %89 = vector.load %arg2[%c0_34, %c0_35] : memref<8x128xf32, #tpu.memory_space<vmem>>, vector<8x128xf32>
      %c0_36 = arith.constant 0 : index
      %c0_37 = arith.constant 0 : index
      %90 = vector.load %arg8[%c0_36, %c0_37] : memref<8x128xf32, #tpu.memory_space<vmem>>, vector<8x128xf32>
      tpu.vector_store %arg8[%c0_36, %c0_37], %89 {strides = array<i32>} : memref<8x128xf32, #tpu.memory_space<vmem>>, vector<8x128xf32>,
    } else {
    }
    %c0 = arith.constant 0 : index
    %c0_1 = arith.constant 0 : index
    %3 = vector.load %arg8[%c0, %c0_1] : memref<8x128xf32, #tpu.memory_space<vmem>>, vector<8x128xf32>
    %c0_2 = arith.constant 0 : index
    %c0_3 = arith.constant 0 : index
    %c0_4 = arith.constant 0 : index
    %4 = vector.load %arg3[%c0_2, %c0_3, %c0_4] : memref<1x5x128xbf16, #tpu.memory_space<vmem>>, vector<1x5x128xbf16>
    %5 = vector.shape_cast %4 : vector<1x5x128xbf16> to vector<5x128xbf16>
    %6 = arith.extf %5 : vector<5x128xbf16> to vector<5x128xf32>
    %7 = vector.extract_strided_slice %6 {offsets = [0, 0], sizes = [1, 128], strides = [1, 1]} : vector<5x128xf32> to vector<1x128xf32>
    %8 = vector.extract_strided_slice %6 {offsets = [1, 0], sizes = [1, 128], strides = [1, 1]} : vector<5x128xf32> to vector<1x128xf32>
    %9 = vector.extract_strided_slice %6 {offsets = [2, 0], sizes = [1, 128], strides = [1, 1]} : vector<5x128xf32> to vector<1x128xf32>
    %10 = vector.extract_strided_slice %6 {offsets = [3, 0], sizes = [1, 128], strides = [1, 1]} : vector<5x128xf32> to vector<1x128xf32>
    %11 = vector.extract_strided_slice %6 {offsets = [4, 0], sizes = [1, 128], strides = [1, 1]} : vector<5x128xf32> to vector<1x128xf32>
    %c0_5 = arith.constant 0 : index
    %c0_6 = arith.constant 0 : index
    %c0_7 = arith.constant 0 : index
    %12 = vector.load %arg4[%c0_5, %c0_6, %c0_7] : memref<1x8x1xbf16, #tpu.memory_space<vmem>>, vector<1x8x1xbf16>
    %13 = vector.shape_cast %12 : vector<1x8x1xbf16> to vector<8x1xbf16>
    %14 = arith.extf %13 : vector<8x1xbf16> to vector<8x1xf32>
    %cst = arith.constant dense<0.000000e+00> : vector<8xf32>
    %15 = vector.multi_reduction <add>, %3, %cst [1] : vector<8x128xf32> to vector<8xf32>
    %16 = vector.shape_cast %15 : vector<8xf32> to vector<8x1xf32>
    %cst_8 = arith.constant 1.280000e+02 : f32
    %17 = vector.broadcast %cst_8 : f32 to vector<8x1xf32>
    %18 = arith.divf %16, %17 : vector<8x1xf32>
    %19 = vector.broadcast %18 : vector<8x1xf32> to vector<8x128xf32>
    %20 = arith.subf %3, %19 : vector<8x128xf32>
    %21 = arith.mulf %20, %20 : vector<8x128xf32>
    %cst_9 = arith.constant dense<0.000000e+00> : vector<8xf32>
    %22 = vector.multi_reduction <add>, %21, %cst_9 [1] : vector<8x128xf32> to vector<8xf32>
    %23 = vector.shape_cast %22 : vector<8xf32> to vector<8x1xf32>
    %cst_10 = arith.constant 1.280000e+02 : f32
    %24 = vector.broadcast %cst_10 : f32 to vector<8x1xf32>
    %25 = arith.divf %23, %24 : vector<8x1xf32>
    %cst_11 = arith.constant 9.99999974E-6 : f32
    %26 = vector.broadcast %cst_11 : f32 to vector<8x1xf32>
    %27 = arith.addf %25, %26 : vector<8x1xf32>
    %28 = math.rsqrt %27 : vector<8x1xf32>
    %29 = vector.broadcast %28 : vector<8x1xf32> to vector<8x128xf32>
    %30 = arith.mulf %20, %29 : vector<8x128xf32>
    %31 = vector.broadcast %7 : vector<1x128xf32> to vector<8x128xf32>
    %32 = arith.mulf %30, %31 : vector<8x128xf32>
    %33 = vector.broadcast %8 : vector<1x128xf32> to vector<8x128xf32>
    %34 = arith.addf %32, %33 : vector<8x128xf32>
    %35 = arith.truncf %34 : vector<8x128xf32> to vector<8x128xbf16>
    %c0_12 = arith.constant 0 : index
    %c0_13 = arith.constant 0 : index
    %c0_14 = arith.constant 0 : index
    %36 = vector.load %arg5[%c0_12, %c0_13, %c0_14] : memref<1x8x8xbf16, #tpu.memory_space<vmem>>, vector<1x8x8xbf16>
    %37 = vector.shape_cast %36 : vector<1x8x8xbf16> to vector<8x8xbf16>
    %cst_15 = arith.constant dense<0.000000e+00> : vector<8x128xf32>
    %38 = tpu.matmul %37, %35, %cst_15 {dimension_numbers = #tpu.dot_dimension_numbers<[1], [0], [0], [1], [0, 0, 1, 1], [], []>} : vector<8x8xbf16>, vector<8x128xbf16>, vector<8x128xf32> -> vector<8x128xf32>
    %39 = vector.broadcast %14 : vector<8x1xf32> to vector<8x128xf32>
    %40 = arith.addf %38, %39 : vector<8x128xf32>
    %41 = arith.addf %40, %3 : vector<8x128xf32>
    %cst_16 = arith.constant 5.000000e-01 : f32
    %42 = vector.broadcast %cst_16 : f32 to vector<8x128xf32>
    %43 = arith.mulf %42, %41 : vector<8x128xf32>
    %cst_17 = arith.constant 0.707106769 : f32
    %44 = vector.broadcast %cst_17 : f32 to vector<8x128xf32>
    %45 = arith.mulf %41, %44 : vector<8x128xf32>
    %46 = math.erf %45 : vector<8x128xf32>
    %cst_18 = arith.constant 1.000000e+00 : f32
    %47 = vector.broadcast %cst_18 : f32 to vector<8x128xf32>
    %48 = arith.addf %47, %46 : vector<8x128xf32>
    %49 = arith.mulf %43, %48 : vector<8x128xf32>
    %cst_19 = arith.constant dense<0.000000e+00> : vector<8xf32>
    %50 = vector.multi_reduction <add>, %49, %cst_19 [1] : vector<8x128xf32> to vector<8xf32>
    %51 = vector.shape_cast %50 : vector<8xf32> to vector<8x1xf32>
    %cst_20 = arith.constant 1.280000e+02 : f32
    %52 = vector.broadcast %cst_20 : f32 to vector<8x1xf32>
    %53 = arith.divf %51, %52 : vector<8x1xf32>
    %54 = vector.broadcast %53 : vector<8x1xf32> to vector<8x128xf32>
    %55 = arith.subf %49, %54 : vector<8x128xf32>
    %56 = arith.mulf %55, %55 : vector<8x128xf32>
    %cst_21 = arith.constant dense<0.000000e+00> : vector<8xf32>
    %57 = vector.multi_reduction <add>, %56, %cst_21 [1] : vector<8x128xf32> to vector<8xf32>
    %58 = vector.shape_cast %57 : vector<8xf32> to vector<8x1xf32>
    %cst_22 = arith.constant 1.280000e+02 : f32
    %59 = vector.broadcast %cst_22 : f32 to vector<8x1xf32>
    %60 = arith.divf %58, %59 : vector<8x1xf32>
    %cst_23 = arith.constant 9.99999974E-6 : f32
    %61 = vector.broadcast %cst_23 : f32 to vector<8x1xf32>
    %62 = arith.addf %60, %61 : vector<8x1xf32>
    %63 = math.rsqrt %62 : vector<8x1xf32>
    %64 = vector.broadcast %63 : vector<8x1xf32> to vector<8x128xf32>
    %65 = arith.mulf %55, %64 : vector<8x128xf32>
    %66 = vector.broadcast %9 : vector<1x128xf32> to vector<8x128xf32>
    %67 = arith.mulf %65, %66 : vector<8x128xf32>
    %68 = vector.broadcast %10 : vector<1x128xf32> to vector<8x128xf32>
    %69 = arith.addf %67, %68 : vector<8x128xf32>
    %70 = arith.truncf %69 : vector<8x128xf32> to vector<8x128xbf16>
    %c0_24 = arith.constant 0 : index
    %c0_25 = arith.constant 0 : index
    %c0_26 = arith.constant 0 : index
    %71 = vector.load %arg6[%c0_24, %c0_25, %c0_26] : memref<1x128x128xbf16, #tpu.memory_space<vmem>>, vector<1x128x128xbf16>
    %72 = vector.shape_cast %71 : vector<1x128x128xbf16> to vector<128x128xbf16>
    %cst_27 = arith.constant dense<0.000000e+00> : vector<8x128xf32>
    %73 = tpu.matmul %70, %72, %cst_27 {dimension_numbers = #tpu.dot_dimension_numbers<[1], [0], [0], [1], [0, 0, 1, 1], [], []>} : vector<8x128xbf16>, vector<128x128xbf16>, vector<8x128xf32> -> vector<8x128xf32>
    %74 = vector.broadcast %11 : vector<1x128xf32> to vector<8x128xf32>
    %75 = arith.addf %73, %74 : vector<8x128xf32>
    %76 = arith.addf %75, %49 : vector<8x128xf32>
    %cst_28 = arith.constant 5.000000e-01 : f32
    %77 = vector.broadcast %cst_28 : f32 to vector<8x128xf32>
    %78 = arith.mulf %77, %76 : vector<8x128xf32>
    %cst_29 = arith.constant 0.707106769 : f32
    %79 = vector.broadcast %cst_29 : f32 to vector<8x128xf32>
    %80 = arith.mulf %76, %79 : vector<8x128xf32>
    %81 = math.erf %80 : vector<8x128xf32>
    %cst_30 = arith.constant 1.000000e+00 : f32
    %82 = vector.broadcast %cst_30 : f32 to vector<8x128xf32>
    %83 = arith.addf %82, %81 : vector<8x128xf32>
    %84 = arith.mulf %78, %83 : vector<8x128xf32>
    %c0_31 = arith.constant 0 : index
    %c0_32 = arith.constant 0 : index
    %85 = vector.load %arg8[%c0_31, %c0_32] : memref<8x128xf32, #tpu.memory_space<vmem>>, vector<8x128xf32>
    tpu.vector_store %arg8[%c0_31, %c0_32], %84 {strides = array<i32>} : memref<8x128xf32, #tpu.memory_space<vmem>>, vector<8x128xf32>,
    %c1_i32 = arith.constant 1 : i32
    %86 = arith.cmpi eq, %arg1, %c1_i32 : i32
    %87 = arith.extui %86 : i1 to i32
    %c0_i32_33 = arith.constant 0 : i32
    %88 = arith.cmpi ne, %87, %c0_i32_33 : i32
    scf.if %88 {
      %c0_34 = arith.constant 0 : index
      %c0_35 = arith.constant 0 : index
      %89 = vector.load %arg7[%c0_34, %c0_35] : memref<8x128xf32, #tpu.memory_space<vmem>>, vector<8x128xf32>
      tpu.vector_store %arg7[%c0_34, %c0_35], %84 {strides = array<i32>} : memref<8x128xf32, #tpu.memory_space<vmem>>, vector<8x128xf32>,
    } else {
    }
    return
  }
  func.func @transform_0(%arg0: i32, %arg1: i32) -> (i32, i32) {
    %c0_i32 = arith.constant 0 : i32
    %c0_i32_0 = arith.constant 0 : i32
    return %arg0, %c0_i32 : i32, i32
  }
  func.func @transform_1(%arg0: i32, %arg1: i32) -> (i32, i32, i32) {
    %c0_i32 = arith.constant 0 : i32
    %c0_i32_0 = arith.constant 0 : i32
    %c0_i32_1 = arith.constant 0 : i32
    return %arg1, %c0_i32, %c0_i32_0 : i32, i32, i32
  }
  func.func @transform_2(%arg0: i32, %arg1: i32) -> (i32, i32, i32) {
    %c0_i32 = arith.constant 0 : i32
    %c0_i32_0 = arith.constant 0 : i32
    %c0_i32_1 = arith.constant 0 : i32
    return %arg1, %c0_i32, %c0_i32_0 : i32, i32, i32
  }
  func.func @transform_3(%arg0: i32, %arg1: i32) -> (i32, i32, i32) {
    %c0_i32 = arith.constant 0 : i32
    %c0_i32_0 = arith.constant 0 : i32
    %c0_i32_1 = arith.constant 0 : i32
    return %arg1, %c0_i32, %c0_i32_0 : i32, i32, i32
  }
  func.func @transform_4(%arg0: i32, %arg1: i32) -> (i32, i32, i32) {
    %c0_i32 = arith.constant 0 : i32
    %c0_i32_0 = arith.constant 0 : i32
    %c0_i32_1 = arith.constant 0 : i32
    return %arg1, %c0_i32, %c0_i32_0 : i32, i32, i32
  }
  func.func @transform_5(%arg0: i32, %arg1: i32) -> (i32, i32) {
    %c0_i32 = arith.constant 0 : i32
    %c0_i32_0 = arith.constant 0 : i32
    return %arg0, %c0_i32 : i32, i32
  }
}

</mosaic_0001>

<llo_original>
// kernel: fire_mixer_forward.1
$region0: #{fire_mixer_forward.1}
  #allocation0 [shape = 'u32[]', space=smem, size = 0x4, offset = 0x4, fixed_abs, tag = 'smem constant byte address 0x4 - core index']
  #allocation1 [shape = 'u32[144,128]{1,0:T(1,128)}', space=vmem, size = 0x12000, scoped, tag = 'internal scratch']
  #allocation2 [shape = 'f32[8,128]{1,0:T(8,128)}', space=vmem, size = 0x1000, scoped, tag = 'scratch operand']
  %s0 = inlined_call_operand.vmem [shape: f32[16,128], index: 0, kind: input, shape index: {}]
  %s1 = inlined_call_operand.vmem [shape: bf16[2,5,128], index: 1, kind: input, shape index: {}]
  %s2 = inlined_call_operand.vmem [shape: bf16[2,8,1], index: 2, kind: input, shape index: {}]
  %s3 = inlined_call_operand.vmem [shape: bf16[2,8,8], index: 3, kind: input, shape index: {}]
  %s4 = inlined_call_operand.hbm [shape: bf16[2,128,128], index: 4, kind: input, shape index: {}]
  %s5 = inlined_call_operand.hbm [shape: f32[16,128], index: 5, kind: output, shape index: {}]
  %s6 = sld [smem:[#allocation0]]
  $region65: #{fire_mixer_forward.1} parent=0
    _
  %s8 = ssub.s32 1, %s6
  %s9 = scalar_select 0, %s8, %s6
  $region1: #{fire_mixer_forward.1} parent=0
    #allocation3 [shape = 'u8[65536]{0}', space=vmem, size = 0x10000, scoped, tag = 'input window, operand 4']
    #allocation4 [shape = 's32[2]{0}', space=sflag, size = 0x8, scoped, tag = 'scoped memory for fire_mixer_forward.1']
    #allocation5 [shape = 's32[2]{0}', space=sflag, size = 0x8, scoped, tag = 'scoped memory for fire_mixer_forward.1']
    #allocation6 [shape = 'u8[8192]{0}', space=vmem, size = 0x2000, scoped, tag = 'output window, operand 0']
    %10 = vsyncpa [#allocation4], 0
    %s11 = scalar_lea.sflag [#allocation4], 1
    %12 = vsyncpa %s11, 0
    %13 = vsyncpa [#allocation5], 0
    %s14 = scalar_lea.sflag [#allocation5], 1
    %15 = vsyncpa %s14, 0
    loop: start=0, step=1, limit=6
    $region2: #{fire_mixer_forward.1} parent=1 // loop_pre_header
      _
    $region3: #{fire_mixer_forward.1} parent=1 // loop_header
      %s17 = sphi 0, %s21
      %p18 = scmp.ge.s32.totalorder %s17, 6
      %s24 = sphi 0, %s36
      %s25 = sphi 0, %s32
      %s26 = sphi 0, %s24
      %s27 = sphi 0, %s25
      %s28 = sphi 0, %s26
      %s29 = sphi 0, %s27
      %s39 = sphi 0, %s41
      %s42 = sphi 0, %s39
      %s43 = sphi 0, %s42
      %s59 = sphi 0, %s43
      %s65 = sphi 0, %s67
      %s68 = sphi 0, %s65
      %s69 = sphi 0, %s68
      %s85 = sphi 0, %s69
      %s91 = sphi 0, %s93
      %s94 = sphi 0, %s91
      %s95 = sphi 0, %s94
      %s111 = sphi 0, %s95
      %s117 = sphi 0, %s119
      %s120 = sphi 0, %s117
      %s121 = sphi 0, %s120
      %s137 = sphi 0, %s121
      %s143 = sphi 0, %s145
      %s146 = sphi 0, %s143
      %s147 = sphi 0, %s146
      %s163 = sphi 0, %s147
      %s169 = sphi 0, %s171
      %s172 = sphi 0, %s169
      %s173 = sphi 0, %s172
      %s189 = sphi 0, %s173
    $region4: #{fire_mixer_forward.1} parent=1 // loop_header_branch
      %20 = sbr.rel (%p18) target = $region8
    $region5: #{fire_mixer_forward.1} parent=1 // loop_body
      %s22 = ssub.s32 %s17, 1
      %s23 = ssub.s32 %s17, 2
      %s30 = sadd.s32 1, %s25
      %p31 = scmp.ge.s32.totalorder %s30, 2
      %s32 = scalar_select %p31, 0, %s30
      %s33 = sadd.s32 1, %s24
      %s34 = scalar_select %p31, %s33, %s24
      %p35 = scmp.ge.s32.totalorder %s34, 2
      %s36 = scalar_select %p35, 0, %s34
      %s37 = ssub.s32 %s24, %s36
      %p38 = scmp.eq.s32.totalorder %s37, 0
      %s40 = sadd.s32 %s39, 1
      %s41 = scalar_select %p38, %s39, %s40
      %p44 = pneg %p38
      %p45 = scmp.eq.s32.totalorder %s17, 3
      %p46 = por %p44, %p45
      %p47 = scmp.ne.s32.totalorder %s39, %s42
      %p48 = scmp.eq.s32.totalorder %s17, 0
      %p49 = por %p47, %p48
      %p50 = scmp.ne.s32.totalorder %s39, %s42
      %p51 = scmp.eq.s32.totalorder %s22, 3
      %p52 = por %p50, %p51
      %p53 = scmp.ne.s32.totalorder %s42, %s43
      %p54 = scmp.eq.s32.totalorder %s22, 0
      %p55 = por %p53, %p54
      %p56 = scmp.ne.s32.totalorder %s42, %s43
      %p57 = scmp.eq.s32.totalorder %s23, 3
      %p58 = por %p56, %p57
      %p60 = scmp.ne.s32.totalorder %s43, %s59
      %p61 = scmp.eq.s32.totalorder %s23, 0
      %p62 = por %p60, %p61
      %s63 = ssub.s32 %s25, %s32
      %p64 = scmp.eq.s32.totalorder %s63, 0
      %s66 = sadd.s32 %s65, 1
      %s67 = scalar_select %p64, %s65, %s66
      %p70 = pneg %p64
      %p71 = scmp.eq.s32.totalorder %s17, 3
      %p72 = por %p70, %p71
      %p73 = scmp.ne.s32.totalorder %s65, %s68
      %p74 = scmp.eq.s32.totalorder %s17, 0
      %p75 = por %p73, %p74
      %p76 = scmp.ne.s32.totalorder %s65, %s68
      %p77 = scmp.eq.s32.totalorder %s22, 3
      %p78 = por %p76, %p77
      %p79 = scmp.ne.s32.totalorder %s68, %s69
      %p80 = scmp.eq.s32.totalorder %s22, 0
      %p81 = por %p79, %p80
      %p82 = scmp.ne.s32.totalorder %s68, %s69
      %p83 = scmp.eq.s32.totalorder %s23, 3
      %p84 = por %p82, %p83
      %p86 = scmp.ne.s32.totalorder %s69, %s85
      %p87 = scmp.eq.s32.totalorder %s23, 0
      %p88 = por %p86, %p87
      %s89 = ssub.s32 %s25, %s32
      %p90 = scmp.eq.s32.totalorder %s89, 0
      %s92 = sadd.s32 %s91, 1
      %s93 = scalar_select %p90, %s91, %s92
      %p96 = pneg %p90
      %p97 = scmp.eq.s32.totalorder %s17, 3
      %p98 = por %p96, %p97
      %p99 = scmp.ne.s32.totalorder %s91, %s94
      %p100 = scmp.eq.s32.totalorder %s17, 0
      %p101 = por %p99, %p100
      %p102 = scmp.ne.s32.totalorder %s91, %s94
      %p103 = scmp.eq.s32.totalorder %s22, 3
      %p104 = por %p102, %p103
      %p105 = scmp.ne.s32.totalorder %s94, %s95
      %p106 = scmp.eq.s32.totalorder %s22, 0
      %p107 = por %p105, %p106
      %p108 = scmp.ne.s32.totalorder %s94, %s95
      %p109 = scmp.eq.s32.totalorder %s23, 3
      %p110 = por %p108, %p109
      %p112 = scmp.ne.s32.totalorder %s95, %s111
      %p113 = scmp.eq.s32.totalorder %s23, 0
      %p114 = por %p112, %p113
      %s115 = ssub.s32 %s25, %s32
      %p116 = scmp.eq.s32.totalorder %s115, 0
      %s118 = sadd.s32 %s117, 1
      %s119 = scalar_select %p116, %s117, %s118
      %p122 = pneg %p116
      %p123 = scmp.eq.s32.totalorder %s17, 3
      %p124 = por %p122, %p123
      %p125 = scmp.ne.s32.totalorder %s117, %s120
      %p126 = scmp.eq.s32.totalorder %s17, 0
      %p127 = por %p125, %p126
      %p128 = scmp.ne.s32.totalorder %s117, %s120
      %p129 = scmp.eq.s32.totalorder %s22, 3
      %p130 = por %p128, %p129
      %p131 = scmp.ne.s32.totalorder %s120, %s121
      %p132 = scmp.eq.s32.totalorder %s22, 0
      %p133 = por %p131, %p132
      %p134 = scmp.ne.s32.totalorder %s120, %s121
      %p135 = scmp.eq.s32.totalorder %s23, 3
      %p136 = por %p134, %p135
      %p138 = scmp.ne.s32.totalorder %s121, %s137
      %p139 = scmp.eq.s32.totalorder %s23, 0
      %p140 = por %p138, %p139
      %s141 = ssub.s32 %s25, %s32
      %p142 = scmp.eq.s32.totalorder %s141, 0
      %s144 = sadd.s32 %s143, 1
      %s145 = scalar_select %p142, %s143, %s144
      %p148 = pneg %p142
      %p149 = scmp.eq.s32.totalorder %s17, 3
      %p150 = por %p148, %p149
      %p151 = scmp.ne.s32.totalorder %s143, %s146
      %p152 = scmp.eq.s32.totalorder %s17, 0
      %p153 = por %p151, %p152
      %p154 = scmp.ne.s32.totalorder %s143, %s146
      %p155 = scmp.eq.s32.totalorder %s22, 3
      %p156 = por %p154, %p155
      %p157 = scmp.ne.s32.totalorder %s146, %s147
      %p158 = scmp.eq.s32.totalorder %s22, 0
      %p159 = por %p157, %p158
      %p160 = scmp.ne.s32.totalorder %s146, %s147
      %p161 = scmp.eq.s32.totalorder %s23, 3
      %p162 = por %p160, %p161
      %p164 = scmp.ne.s32.totalorder %s147, %s163
      %p165 = scmp.eq.s32.totalorder %s23, 0
      %p166 = por %p164, %p165
      %s167 = ssub.s32 %s24, %s36
      %p168 = scmp.eq.s32.totalorder %s167, 0
      %s170 = sadd.s32 %s169, 1
      %s171 = scalar_select %p168, %s169, %s170
      %p174 = pneg %p168
      %p175 = scmp.eq.s32.totalorder %s17, 3
      %p176 = por %p174, %p175
      %p177 = scmp.ne.s32.totalorder %s169, %s172
      %p178 = scmp.eq.s32.totalorder %s17, 0
      %p179 = por %p177, %p178
      %p180 = scmp.ne.s32.totalorder %s169, %s172
      %p181 = scmp.eq.s32.totalorder %s22, 3
      %p182 = por %p180, %p181
      %p183 = scmp.ne.s32.totalorder %s172, %s173
      %p184 = scmp.eq.s32.totalorder %s22, 0
      %p185 = por %p183, %p184
      %p186 = scmp.ne.s32.totalorder %s172, %s173
      %p187 = scmp.eq.s32.totalorder %s23, 3
      %p188 = por %p186, %p187
      %p190 = scmp.ne.s32.totalorder %s173, %s189
      %p191 = scmp.eq.s32.totalorder %s23, 0
      %p192 = por %p190, %p191
      %p193 = scmp.le.s32.totalorder 1, %s17
      %p194 = scmp.lt.s32.totalorder %s17, 5
      %p195 = pnand %p193, %p194
      %p196 = pneg %p195
      // Predicated region
      $region9: #{fire_mixer_forward.1} parent=5 // pred_check
        _
      $region10: #{fire_mixer_forward.1} parent=5 // pred_check_branch
        %198 = sbr.rel (%p195) target = $region12
      $region11: #{fire_mixer_forward.1} parent=5 // pred_region
        %s199 = ssub.s32 %s17, 1
      $region12: #{fire_mixer_forward.1} parent=5 // pred_fallthru
        _
      %p200 = scmp.lt.s32.totalorder %s17, 4
      // Predicated region
      $region13: #{fire_mixer_forward.1} parent=5 // pred_check
        %p201 = pneg %p200
      $region14: #{fire_mixer_forward.1} parent=5 // pred_check_branch
        %203 = sbr.rel (%p201) target = $region16
      $region15: #{fire_mixer_forward.1} parent=5 // pred_region
        // Predicated region
        $region17: #{fire_mixer_forward.1} parent=15 // pred_check
          %p204 = pneg %p49
        $region18: #{fire_mixer_forward.1} parent=15 // pred_check_branch
          %206 = sbr.rel (%p204) target = $region20
        $region19: #{fire_mixer_forward.1} parent=15 // pred_region
          %p207 = scmp.lt.s32.totalorder %s24, 1
          %s208 = scalar_select %p207, %s24, 1
          %s209 = smul.addr %s208, 8
          %s210 = scalar_lea.vmem %s0, %s209
        $region20: #{fire_mixer_forward.1} parent=15 // pred_fallthru
          _
        // Predicated region
        $region21: #{fire_mixer_forward.1} parent=15 // pred_check
          %p211 = pneg %p75
        $region22: #{fire_mixer_forward.1} parent=15 // pred_check_branch
          %213 = sbr.rel (%p211) target = $region24
        $region23: #{fire_mixer_forward.1} parent=15 // pred_region
          %p214 = scmp.lt.s32.totalorder %s25, 1
          %s215 = scalar_select %p214, %s25, 1
          %s216 = smul.addr %s215, 4
          %s217 = scalar_lea.vmem %s1, %s216
        $region24: #{fire_mixer_forward.1} parent=15 // pred_fallthru
          _
        // Predicated region
        $region25: #{fire_mixer_forward.1} parent=15 // pred_check
          %p218 = pneg %p101
        $region26: #{fire_mixer_forward.1} parent=15 // pred_check_branch
          %220 = sbr.rel (%p218) target = $region28
        $region27: #{fire_mixer_forward.1} parent=15 // pred_region
          %p221 = scmp.lt.s32.totalorder %s25, 1
          %s222 = scalar_select %p221, %s25, 1
          %s223 = smul.addr %s222, 4
          %s224 = scalar_lea.vmem %s2, %s223
        $region28: #{fire_mixer_forward.1} parent=15 // pred_fallthru
          _
        // Predicated region
        $region29: #{fire_mixer_forward.1} parent=15 // pred_check
          %p225 = pneg %p127
        $region30: #{fire_mixer_forward.1} parent=15 // pred_check_branch
          %227 = sbr.rel (%p225) target = $region32
        $region31: #{fire_mixer_forward.1} parent=15 // pred_region
          %p228 = scmp.lt.s32.totalorder %s25, 1
          %s229 = scalar_select %p228, %s25, 1
          %s230 = smul.addr %s229, 4
          %s231 = scalar_lea.vmem %s3, %s230
        $region32: #{fire_mixer_forward.1} parent=15 // pred_fallthru
          _
        // Predicated region
        $region33: #{fire_mixer_forward.1} parent=15 // pred_check
          %p232 = pneg %p153
        $region34: #{fire_mixer_forward.1} parent=15 // pred_check_branch
          %234 = sbr.rel (%p232) target = $region36
        $region35: #{fire_mixer_forward.1} parent=15 // pred_region
          %s235 = sand.u32 %s143, 1
          %s236 = scalar_lea.sflag [#allocation4], %s235
          %s237 = sand.u32 %s143, 1
          %s238 = smul.addr %s237, 64
          %s239 = scalar_lea.vmem [#allocation3], %s238
          %s241 = ssub.s32 1024, 1024
          %242 = vsyncadd %s236, %s241
          %s243 = smul.addr %s25, 16
          %s244 = smul.addr %s243, 64
          %s245 = scalar_lea.hbm %s4, %s244
          %s246 = sshll.u32 %s239, 4
          %s247 = int_to_ptr.vmem [resolvable:$true] %s246
          %252 = dma.hbm_to_vmem [thread:$0]  %s245, 1024, %s247, %s236, 64, 64, 4
        $region36: #{fire_mixer_forward.1} parent=15 // pred_fallthru
          _
      $region16: #{fire_mixer_forward.1} parent=5 // pred_fallthru
        _
      %p253 = scmp.le.s32.totalorder 1, %s17
      %p254 = scmp.lt.s32.totalorder %s17, 5
      %p255 = pnand %p253, %p254
      %p256 = pneg %p255
      // Predicated region
      $region37: #{fire_mixer_forward.1} parent=5 // pred_check
        _
      $region38: #{fire_mixer_forward.1} parent=5 // pred_check_branch
        %258 = sbr.rel (%p255) target = $region40
      $region39: #{fire_mixer_forward.1} parent=5 // pred_region
        %s259 = ssub.s32 %s17, 1
        %s260 = sand.u32 %s146, 1
        %s261 = scalar_lea.sflag [#allocation4], %s260
        %s262 = sand.u32 %s146, 1
        %s263 = smul.addr %s262, 64
        %s264 = scalar_lea.vmem [#allocation3], %s263
        // Predicated region
        $region41: #{fire_mixer_forward.1} parent=39 // pred_check
          %p265 = pneg %p159
        $region42: #{fire_mixer_forward.1} parent=39 // pred_check_branch
          %267 = sbr.rel (%p265) target = $region44
        $region43: #{fire_mixer_forward.1} parent=39 // pred_region
          %268 = dma.done %s261, 1024
        $region44: #{fire_mixer_forward.1} parent=39 // pred_fallthru
          _
        %p269 = scmp.lt.s32.totalorder %s26, 1
        %s270 = scalar_select %p269, %s26, 1
        %s271 = smul.addr %s270, 8
        %s272 = scalar_lea.vmem %s0, %s271
        %p273 = pneg %p55
        %p274 = pneg %p52
        %p275 = scmp.lt.s32.totalorder %s27, 1
        %s276 = scalar_select %p275, %s27, 1
        %s277 = smul.addr %s276, 4
        %s278 = scalar_lea.vmem %s1, %s277
        %p279 = pneg %p81
        %p280 = pneg %p78
        %p281 = scmp.lt.s32.totalorder %s27, 1
        %s282 = scalar_select %p281, %s27, 1
        %s283 = smul.addr %s282, 4
        %s284 = scalar_lea.vmem %s2, %s283
        %p285 = pneg %p107
        %p286 = pneg %p104
        %p287 = scmp.lt.s32.totalorder %s27, 1
        %s288 = scalar_select %p287, %s27, 1
        %s289 = smul.addr %s288, 4
        %s290 = scalar_lea.vmem %s3, %s289
        %p291 = pneg %p133
        %p292 = pneg %p130
        %s293 = sand.u32 %s146, 1
        %s294 = scalar_lea.sflag [#allocation4], %s293
        %s295 = sand.u32 %s146, 1
        %s296 = smul.addr %s295, 64
        %s297 = scalar_lea.vmem [#allocation3], %s296
        %p298 = pneg %p159
        %p299 = pneg %p156
        %p300 = pneg %p185
        %p301 = pneg %p182
        %s302 = sand.u32 %s172, 1
        %s303 = scalar_lea.sflag [#allocation5], %s302
        %s304 = sand.u32 %s172, 1
        %s305 = smul.addr %s304, 8
        %s306 = scalar_lea.vmem [#allocation6], %s305
        %p307 = scmp.lt.s32.totalorder %s26, 1
        %s308 = scalar_select %p307, %s26, 1
        %s309 = smul.addr %s308, 8
        %s310 = scalar_lea.vmem %s0, %s309
        %p311 = scmp.lt.s32.totalorder %s27, 1
        %s312 = scalar_select %p311, %s27, 1
        %s313 = smul.addr %s312, 4
        %s314 = scalar_lea.vmem %s1, %s313
        %p315 = scmp.lt.s32.totalorder %s27, 1
        %s316 = scalar_select %p315, %s27, 1
        %s317 = smul.addr %s316, 4
        %s318 = scalar_lea.vmem %s2, %s317
        %p319 = scmp.lt.s32.totalorder %s27, 1
        %s320 = scalar_select %p319, %s27, 1
        %s321 = smul.addr %s320, 4
        %s322 = scalar_lea.vmem %s3, %s321
        %p324 = scmp.eq.s32.totalorder %s27, 0
        // Predicated region
        $region45: #{fire_mixer_forward.1} parent=39 // pred_check
          %p325 = pneg %p324
        $region46: #{fire_mixer_forward.1} parent=39 // pred_check_branch
          %327 = sbr.rel (%p325) target = $region48
        $region47: #{fire_mixer_forward.1} parent=39 // pred_region
          %v328 = vld [vmem:[%s310] sm:$0xff]
          %329 = vst [vmem:[#allocation2] sm:$0xff] %v328
        $region48: #{fire_mixer_forward.1} parent=39 // pred_fallthru
          _
        %v330 = vld [vmem:[#allocation2] sm:$0xff]
        %v331 = vld [vmem:[%s314] sm:$0x7]
        %v332 = vunpack.c.l.bf16 %v331
        %v333 = vld [vmem:[%s318] sm:$0xf]
        %v334 = vunpack.c.l.bf16 %v333
        %335 = vadd.xlane.f32.xlu0 %v330
        %v336 = vpop.xlane.xlu0 %335
        %v337 = vrcp.pop 128.0
        %v338 = vmul.f32 %v336, %v337
        %v339 = vsub.f32 %v330, %v338
        %v340 = vmul.f32 %v339, %v339
        %341 = vadd.xlane.f32.xlu0 %v340
        %v342 = vpop.xlane.xlu0 %341
        %v343 = vmul.f32 %v342, %v337
        %v344 = vadd.f32 %v343, 1e-05
        %v345 = vrsqrt.pop %v344
        %v346 = vmul.f32 %v339, %v345
        %v347 = vlaneseq
        %v348 = vshrl.u32 %v347, 7
        %v349 = vsub.s32 0, %v348
        %v350 = vrot.slane %v332, %v349
        %v351 = vmul.f32 %v346, %v350
        %v352 = vlaneseq
        %v353 = vshrl.u32 %v352, 7
        %v354 = vsub.s32 1, %v353
        %v355 = vrot.slane %v332, %v354
        %v356 = vadd.f32 %v351, %v355
        %v357 = vpack.c.bf16 %v356, %v356
        %v358 = vld [vmem:[%s322] sm:$0xf]
        %360 = vset.pattern.permute.xlu0 0
        %361 = vperm.xlu0 %360, %v334
        %v362 = vpop.permute.xlu0 %361
        %vm364 = vcmask 64512
        %v366 = vsel %vm364, %v358, 0
        %vm368 = vcmask 1043456
        %v370 = vsel %vm368, %v357, 0
        %372 = vmatprep.subr.bf16.mxu0 0
        %373 = vmatpush1.bf16.msra.mxu0 %v370
        %374 = vmatprep.subr.bf16.mxu0 0
        %375 = vmatpush1.bf16.msra.mxu0 0
        %376 = vmatprep.subr.bf16.mxu0 0
        %377 = vmatpush1.bf16.msra.mxu0 0
        %378 = vmatprep.subr.bf16.mxu0 0
        %379 = vmatpush1.bf16.msra.mxu0 0
        %380 = vmatprep.subr.bf16.mxu0 0
        %381 = vmatpush1.bf16.msra.mxu0 0
        %382 = vmatprep.subr.bf16.mxu0 0
        %383 = vmatpush1.bf16.msra.mxu0 0
        %384 = vmatprep.subr.bf16.mxu0 0
        %385 = vmatpush1.bf16.msra.mxu0 0
        %386 = vmatprep.subr.bf16.mxu0 0
        %387 = vmatpush1.bf16.msra.mxu0 0
        %388 = vmatprep.subr.bf16.mxu0 0
        %389 = vmatpush1.bf16.msra.mxu0 0
        %390 = vmatprep.subr.bf16.mxu0 0
        %391 = vmatpush1.bf16.msra.mxu0 0
        %392 = vmatprep.subr.bf16.mxu0 0
        %393 = vmatpush1.bf16.msra.mxu0 0
        %394 = vmatprep.subr.bf16.mxu0 0
        %395 = vmatpush1.bf16.msra.mxu0 0
        %396 = vmatprep.subr.bf16.mxu0 0
        %397 = vmatpush1.bf16.msra.mxu0 0
        %398 = vmatprep.subr.bf16.mxu0 0
        %399 = vmatpush1.bf16.msra.mxu0 0
        %400 = vmatprep.subr.bf16.mxu0 0
        %401 = vmatpush1.bf16.msra.mxu0 0
        %402 = vmatprep.subr.bf16.mxu0 0
        %403 = vmatpush1.bf16.msra.mxu0 0
        %404 = vmatprep.mubr.bf16.mxu0 0
        %405 = vmatmul.mubr.bf16.gmra.mrb[0].mxu0 %v366
        %v406 = vpop.f32.mrb[0].mxu0
        %v407 = vadd.f32 %v362, %v406
        %v408 = vpop.f32.mrb[0].mxu0
        %v409 = vpop.f32.mrb[0].mxu0
        %v410 = vpop.f32.mrb[0].mxu0
        %411 = vdwg.mxu0
        %v412 = vadd.f32 %v407, %v330
        %v413 = vmul.f32 %v412, 0.5
        %v414 = vmul.f32 %v412, 0.70710677
        %v415 = verf.f32.pop %v414
        %v416 = vadd.f32 %v415, 1.0
        %v417 = vmul.f32 %v413, %v416
        %418 = vadd.xlane.f32.xlu0 %v417
        %v419 = vpop.xlane.xlu0 %418
        %v420 = vmul.f32 %v419, %v337
        %v421 = vsub.f32 %v417, %v420
        %v422 = vmul.f32 %v421, %v421
        %423 = vadd.xlane.f32.xlu0 %v422
        %v424 = vpop.xlane.xlu0 %423
        %v425 = vmul.f32 %v424, %v337
        %v426 = vadd.f32 %v425, 1e-05
        %v427 = vrsqrt.pop %v426
        %v428 = vmul.f32 %v421, %v427
        %v429 = vlaneseq
        %v430 = vshrl.u32 %v429, 7
        %v431 = vsub.s32 2, %v430
        %v432 = vrot.slane %v332, %v431
        %v433 = vmul.f32 %v428, %v432
        %v434 = vlaneseq
        %v435 = vshrl.u32 %v434, 7
        %v436 = vsub.s32 3, %v435
        %v437 = vrot.slane %v332, %v436
        %v438 = vadd.f32 %v433, %v437
        %v439 = vpack.c.bf16 %v438, %v438
        %v440 = vld [vmem:[%s264] sm:$0xf]
        %v441 = vld [vmem:[%s264 + $0x4] sm:$0xf]
        %v442 = vld [vmem:[%s264 + $0x8] sm:$0xf]
        %v443 = vld [vmem:[%s264 + $0xc] sm:$0xf]
        %v444 = vld [vmem:[%s264 + $0x10] sm:$0xf]
        %v445 = vld [vmem:[%s264 + $0x14] sm:$0xf]
        %v446 = vld [vmem:[%s264 + $0x18] sm:$0xf]
        %v447 = vld [vmem:[%s264 + $0x1c] sm:$0xf]
        %v448 = vld [vmem:[%s264 + $0x20] sm:$0xf]
        %v449 = vld [vmem:[%s264 + $0x24] sm:$0xf]
        %v450 = vld [vmem:[%s264 + $0x28] sm:$0xf]
        %v451 = vld [vmem:[%s264 + $0x2c] sm:$0xf]
        %v452 = vld [vmem:[%s264 + $0x30] sm:$0xf]
        %v453 = vld [vmem:[%s264 + $0x34] sm:$0xf]
        %v454 = vld [vmem:[%s264 + $0x38] sm:$0xf]
        %v455 = vld [vmem:[%s264 + $0x3c] sm:$0xf]
        %v456 = vlaneseq
        %v457 = vshrl.u32 %v456, 7
        %v458 = vsub.s32 4, %v457
        %v459 = vrot.slane %v332, %v458
        %v476 = vunpack.c.l.b16 %v440
        %v477 = vunpack.c.l.b16 %v441
        %v478 = vunpack.c.l.b16 %v442
        %v479 = vunpack.c.l.b16 %v443
        %v480 = vunpack.c.l.b16 %v444
        %v481 = vunpack.c.l.b16 %v445
        %v482 = vunpack.c.l.b16 %v446
        %v483 = vunpack.c.l.b16 %v447
        %v484 = vunpack.c.l.b16 %v448
        %v485 = vunpack.c.l.b16 %v449
        %v486 = vunpack.c.l.b16 %v450
        %v487 = vunpack.c.l.b16 %v451
        %v488 = vunpack.c.l.b16 %v452
        %v489 = vunpack.c.l.b16 %v453
        %v490 = vunpack.c.l.b16 %v454
        %v491 = vunpack.c.l.b16 %v455
        %v492 = vpack.c.b16 %v477, %v476
        %v493 = vpack.c.b16 %v479, %v478
        %v494 = vpack.c.b16 %v481, %v480
        %v495 = vpack.c.b16 %v483, %v482
        %v496 = vpack.c.b16 %v485, %v484
        %v497 = vpack.c.b16 %v487, %v486
        %v498 = vpack.c.b16 %v489, %v488
        %v499 = vpack.c.b16 %v491, %v490
        %508 = vmatprep.subr.bf16.mxu0 0
        %509 = vmatpush1.bf16.msra.mxu0 %v492
        %510 = vmatprep.subr.bf16.mxu0 0
        %511 = vmatpush1.bf16.msra.mxu0 %v493
        %512 = vmatprep.subr.bf16.mxu0 0
        %513 = vmatpush1.bf16.msra.mxu0 %v494
        %514 = vmatprep.subr.bf16.mxu0 0
        %515 = vmatpush1.bf16.msra.mxu0 %v495
        %516 = vmatprep.subr.bf16.mxu0 0
        %517 = vmatpush1.bf16.msra.mxu0 %v496
        %518 = vmatprep.subr.bf16.mxu0 0
        %519 = vmatpush1.bf16.msra.mxu0 %v497
        %520 = vmatprep.subr.bf16.mxu0 0
        %521 = vmatpush1.bf16.msra.mxu0 %v498
        %522 = vmatprep.subr.bf16.mxu0 0
        %523 = vmatpush1.bf16.msra.mxu0 %v499
        %524 = vmatprep.subr.bf16.mxu0 0
        %525 = vmatpush1.bf16.msra.mxu0 0
        %526 = vmatprep.subr.bf16.mxu0 0
        %527 = vmatpush1.bf16.msra.mxu0 0
        %528 = vmatprep.subr.bf16.mxu0 0
        %529 = vmatpush1.bf16.msra.mxu0 0
        %530 = vmatprep.subr.bf16.mxu0 0
        %531 = vmatpush1.bf16.msra.mxu0 0
        %532 = vmatprep.subr.bf16.mxu0 0
        %533 = vmatpush1.bf16.msra.mxu0 0
        %534 = vmatprep.subr.bf16.mxu0 0
        %535 = vmatpush1.bf16.msra.mxu0 0
        %536 = vmatprep.subr.bf16.mxu0 0
        %537 = vmatpush1.bf16.msra.mxu0 0
        %538 = vmatprep.subr.bf16.mxu0 0
        %539 = vmatpush1.bf16.msra.mxu0 0
        %540 = vmatprep.mubr.bf16.mxu0 0
        %541 = vmatmul.mubr.bf16.gmra.mrb[0].mxu0 %v439
        %v542 = vpop.f32.mrb[0].mxu0
        %v543 = vadd.f32 %v459, %v542
        %v544 = vpop.f32.mrb[0].mxu0
        %v545 = vpop.f32.mrb[0].mxu0
        %v546 = vpop.f32.mrb[0].mxu0
        %547 = vdwg.mxu0
        %v548 = vadd.f32 %v543, %v417
        %v549 = vmul.f32 %v548, 0.5
        %v550 = vmul.f32 %v548, 0.70710677
        %v551 = verf.f32.pop %v550
        %v552 = vadd.f32 %v551, 1.0
        %v553 = vmul.f32 %v549, %v552
        %554 = vst [vmem:[#allocation2] sm:$0xff] %v553
        %p555 = scmp.eq.s32.totalorder %s27, 1
        // Predicated region
        $region49: #{fire_mixer_forward.1} parent=39 // pred_check
          %p556 = pneg %p555
        $region50: #{fire_mixer_forward.1} parent=39 // pred_check_branch
          %558 = sbr.rel (%p556) target = $region52
        $region51: #{fire_mixer_forward.1} parent=39 // pred_region
          %559 = vst [vmem:[%s306] sm:$0xff] %v553
        $region52: #{fire_mixer_forward.1} parent=39 // pred_fallthru
          _
        %s560 = sand.u32 %s172, 1
        %s561 = scalar_lea.sflag [#allocation5], %s560
        %s562 = sand.u32 %s172, 1
        %s563 = smul.addr %s562, 8
        %s564 = scalar_lea.vmem [#allocation6], %s563
        // Predicated region
        $region53: #{fire_mixer_forward.1} parent=39 // pred_check
          %p565 = pneg %p182
        $region54: #{fire_mixer_forward.1} parent=39 // pred_check_branch
          %567 = sbr.rel (%p565) target = $region56
        $region55: #{fire_mixer_forward.1} parent=39 // pred_region
          %s569 = ssub.s32 128, 128
          %570 = vsyncadd %s561, %s569
          %s571 = smul.addr %s26, 128
          %s572 = scalar_lea.hbm %s5, %s571
          %s574 = sshll.u32 %s564, 4
          %s575 = int_to_ptr.vmem [resolvable:$true] %s574
          %577 = dma.vmem_to_hbm [thread:$0]  %s575, 128, %s572, %s561
        $region56: #{fire_mixer_forward.1} parent=39 // pred_fallthru
          _
      $region40: #{fire_mixer_forward.1} parent=5 // pred_fallthru
        _
      %p578 = scmp.le.s32.totalorder 2, %s17
      // Predicated region
      $region57: #{fire_mixer_forward.1} parent=5 // pred_check
        %p579 = pneg %p578
      $region58: #{fire_mixer_forward.1} parent=5 // pred_check_branch
        %581 = sbr.rel (%p579) target = $region60
      $region59: #{fire_mixer_forward.1} parent=5 // pred_region
        %s582 = ssub.s32 %s17, 2
        // Predicated region
        $region61: #{fire_mixer_forward.1} parent=59 // pred_check
          %p583 = pneg %p188
        $region62: #{fire_mixer_forward.1} parent=59 // pred_check_branch
          %585 = sbr.rel (%p583) target = $region64
        $region63: #{fire_mixer_forward.1} parent=59 // pred_region
          %s586 = sand.u32 %s173, 1
          %s587 = scalar_lea.sflag [#allocation5], %s586
          %s588 = sand.u32 %s173, 1
          %s589 = smul.addr %s588, 8
          %s590 = scalar_lea.vmem [#allocation6], %s589
          %591 = dma.done %s587, 128
        $region64: #{fire_mixer_forward.1} parent=59 // pred_fallthru
          _
      $region60: #{fire_mixer_forward.1} parent=5 // pred_fallthru
        _
    $region6: #{fire_mixer_forward.1} parent=1 // loop_footer
      %s21 = sadd.s32 1, %s17
    $region7: #{fire_mixer_forward.1} parent=1 // loop_footer_branch
      %16 = sbr.rel target = $region3
    $region8: #{fire_mixer_forward.1} parent=1 // loop_exit
      _
    %592 = vsyncpa [#allocation4], 1
    %s593 = scalar_lea.sflag [#allocation4], 1
    %594 = vsyncpa %s593, 1
    %595 = vsyncpa [#allocation5], 1
    %s596 = scalar_lea.sflag [#allocation5], 1
    %597 = vsyncpa %s596, 1

</llo_original>
